<compile_context>
chip_gen: v6e
topology: v6e:2x2x1
jax: 0.10.0
libtpu: 0.0.40
codegen_flags: <defaults>
</compile_context>

<pallas_src>
import jax
import jax.numpy as jnp
from jax.experimental import pallas as pl
from jax.experimental.pallas import tpu as pltpu

BN_EPS = 1e-5
LRELU_SLOPE = 0.2


def _bn_lrelu(h, gamma, beta):
    """Training-mode BatchNorm1d (batch stats, biased var) + LeakyReLU(0.2).

    Affine folded into a single scale/shift so the [B,H] tensor sees one mul
    and one add; one-pass variance (E[h^2] - mean^2) clamped to >= 0.
    """
    mean = jnp.mean(h, axis=0, keepdims=True)
    msq = jnp.mean(h * h, axis=0, keepdims=True)
    var = jnp.maximum(msq - mean * mean, 0.0)            # clamp: no NaN via rsqrt
    scale = gamma * jax.lax.rsqrt(var + BN_EPS)          # [1, H]
    shift = beta - mean * scale                          # [1, H]
    h = h * scale + shift
    return jnp.maximum(h, LRELU_SLOPE * h)               # slope < 1 => exact


def discriminator_kernel(x_ref, w1_ref, vec_ref, w2_hbm_ref, o_ref,
                         w2_vmem, w2_sem):
    # vec_ref rows (f32, [6, H]): 0=g1, 1=be1, 2=g2, 3=be2, 4=w3, 5=b3 (bcast)
    mm_dtype = w1_ref.dtype

    # Kick off the H x H w2 HBM -> VMEM DMA immediately; it overlaps layer 1.
    w2_copy = pltpu.make_async_copy(w2_hbm_ref, w2_vmem, w2_sem)
    w2_copy.start()

    # ---- Linear(D -> H) [bias cancelled by BN] + BN + LeakyReLU -----------
    # x arrives f32; cast to the matmul dtype on the VPU (free slack) here.
    x = x_ref[...].astype(mm_dtype)
    h = jnp.dot(x, w1_ref[...], preferred_element_type=jnp.float32)
    h = _bn_lrelu(h, vec_ref[0:1, :], vec_ref[1:2, :])

    # ---- Linear(H -> H) [bias cancelled by BN] + BN + LeakyReLU -----------
    w2_copy.wait()
    h = jnp.dot(h.astype(mm_dtype), w2_vmem[...],
                preferred_element_type=jnp.float32)
    h = _bn_lrelu(h, vec_ref[2:3, :], vec_ref[3:4, :])

    # ---- Linear(H -> 1) + Sigmoid ------------------------------------------
    # Output feature dim is 1 -> lane reduction instead of a degenerate MXU op.
    z = jnp.sum(h * vec_ref[4:5, :], axis=-1, keepdims=True) + vec_ref[5:6, 0:1]
    o_ref[...] = 1.0 / (1.0 + jnp.exp(-z))


def init_params(key, input_size):
    """Deterministic parameter init matching the PyTorch module shapes."""
    D, H = input_size, 2 * input_size
    ks = jax.random.split(key, 6)

    def lin(kw, kb, fan_in, fan_out):
        bound = 1.0 / jnp.sqrt(fan_in)
        w = jax.random.uniform(kw, (fan_out, fan_in), jnp.float32, -bound, bound)
        b = jax.random.uniform(kb, (fan_out,), jnp.float32, -bound, bound)
        return w, b

    w1, b1 = lin(ks[0], ks[1], D, H)
    w2, b2 = lin(ks[2], ks[3], H, H)
    w3, b3 = lin(ks[4], ks[5], H, 1)
    g1, be1 = jnp.ones((H,), jnp.float32), jnp.zeros((H,), jnp.float32)
    g2, be2 = jnp.ones((H,), jnp.float32), jnp.zeros((H,), jnp.float32)
    return dict(w1=w1, b1=b1, g1=g1, be1=be1,
                w2=w2, b2=b2, g2=g2, be2=be2,
                w3=w3, b3=b3)


def prepare_params(params, *, matmul_dtype=jnp.bfloat16):
    """One-time packing: pre-transposed / pre-cast matmul weights + packed vecs.

    Do this ONCE (at init / checkpoint load) and reuse the returned pytree for
    every forward call — the wrapper performs no weight transforms per call.
    """
    H, D = params["w1"].shape                       # torch Linear: (out, in)
    w1t = jnp.asarray(params["w1"].T, dtype=matmul_dtype)     # (D, H)
    w2t = jnp.asarray(params["w2"].T, dtype=matmul_dtype)     # (H, H)
    # b1/b2 intentionally dropped (cancelled by training-mode BatchNorm).
    vecs = jnp.concatenate([
        params["g1"].reshape(1, H),
        params["be1"].reshape(1, H),
        params["g2"].reshape(1, H),
        params["be2"].reshape(1, H),
        params["w3"].reshape(1, H),
        jnp.broadcast_to(params["b3"].reshape(1, 1), (1, H)),
    ], axis=0).astype(jnp.float32)
    return dict(w1t=w1t, w2t=w2t, vecs=vecs)


def _physical_vmem_bytes():
    try:
        return int(pltpu.get_tpu_info().vmem_capacity_bytes)
    except Exception:
        return 64 << 20                              # conservative (v7x-sized)


def discriminator_linear(x, prepared):
    """Fused forward pass using pre-packed params from prepare_params()."""
    w1t, w2t, vecs = prepared["w1t"], prepared["w2t"], prepared["vecs"]
    D, H = w1t.shape
    mm_dtype = w1t.dtype
    mm_bytes = jnp.dtype(mm_dtype).itemsize

    # x may be (B, ...); flatten like x.view(x.size(0), -1). Stays f32; the
    # kernel casts it to the matmul dtype on-chip.
    B = x.shape[0]
    x2 = x.reshape(B, -1).astype(jnp.float32)
    assert x2.shape[1] == D, (x2.shape, D)

    # Generation-aware VMEM budget: 48 MiB ceiling on 64 MiB parts (v7x),
    # ~70% of capacity on 128 MiB parts (v5e / v6e).
    phys = _physical_vmem_bytes()
    cap = (48 << 20) if phys <= (64 << 20) else int(0.7 * phys)
    est = (2 * B * D * 4                 # x (f32, pipelining headroom)
           + 2 * D * H * mm_bytes        # w1
           + H * H * mm_bytes            # w2 VMEM scratch (single copy)
           + 2 * 6 * H * 4               # packed vecs
           + 2 * B * 4                   # output
           + 6 * B * H * 4)              # activations / temporaries (f32)
    vmem_limit = int(min(max(est + (4 << 20), 16 << 20), cap))

    vmem = pl.BlockSpec(memory_space=pltpu.MemorySpace.VMEM)
    return pl.pallas_call(
        discriminator_kernel,
        out_shape=jax.ShapeDtypeStruct((B, 1), jnp.float32),
        in_specs=[vmem,                                 # x  (f32)
                  vmem,                                 # w1t
                  vmem,                                 # packed vecs
                  pl.BlockSpec(memory_space=pl.ANY)],   # w2t: manual DMA overlap
        out_specs=vmem,
        scratch_shapes=[pltpu.VMEM((H, H), mm_dtype),   # w2 landing buffer
                        pltpu.SemaphoreType.DMA],       # w2 DMA semaphore
        compiler_params=pltpu.CompilerParams(vmem_limit_bytes=vmem_limit),
    )(x2, w1t, vecs, w2t)


def reference(x, params):
    """Pure-JAX reference mirroring the PyTorch module (training-mode BN)."""
    B = x.shape[0]
    h = x.reshape(B, -1).astype(jnp.float32)

    def bn_lrelu(h, g, b):
        m = jnp.mean(h, axis=0, keepdims=True)
        v = jnp.mean((h - m) ** 2, axis=0, keepdims=True)
        h = (h - m) / jnp.sqrt(v + BN_EPS) * g + b
        return jnp.where(h > 0, h, LRELU_SLOPE * h)

    h = h @ params["w1"].T + params["b1"]
    h = bn_lrelu(h, params["g1"], params["be1"])
    h = h @ params["w2"].T + params["b2"]
    h = bn_lrelu(h, params["g2"], params["be2"])
    z = h @ params["w3"].T + params["b3"]
    return jax.nn.sigmoid(z)


if __name__ == "__main__":
    key = jax.random.PRNGKey(0)
    k_x, k_p = jax.random.split(key)

    B, D = 8, 64                      # batch=8, input_size=64 -> H=128
    x = jax.random.normal(k_x, (B, D), jnp.float32)
    params = init_params(k_p, D)

    ref = reference(x, params)

    # Strict f32 path: must match the PyTorch-equivalent reference tightly
    # (bias removal / folded BN affine are algebraically exact in train mode).
    prep_f32 = prepare_params(params, matmul_dtype=jnp.float32)
    out_f32 = jax.block_until_ready(discriminator_linear(x, prep_f32))
    assert out_f32.shape == (B, 1)
    assert jnp.allclose(out_f32, ref, atol=1e-5, rtol=1e-5), (out_f32, ref)

    # Default bf16-MXU path: same semantics, reduced matmul input precision
    # (perturbs BN batch stats slightly; covered by the loose tolerance).
    prep_bf16 = prepare_params(params)            # pre-transposed + pre-cast once
    out_bf16 = jax.block_until_ready(discriminator_linear(x, prep_bf16))
    assert out_bf16.shape == (B, 1)
    assert jnp.allclose(out_bf16, ref, atol=5e-2, rtol=5e-2), (out_bf16, ref)

    print("KERNEL_OK")
</pallas_src>

<mosaic_0001>
module attributes {stable_mosaic.version = 11 : i64} {
  func.func @discriminator_kernel(%arg0: memref<8x64xf32, #tpu.memory_space<vmem>>, %arg1: memref<64x128xf32, #tpu.memory_space<vmem>>, %arg2: memref<6x128xf32, #tpu.memory_space<vmem>>, %arg3: memref<128x128xf32, #tpu.memory_space<any>>, %arg4: memref<8x1xf32, #tpu.memory_space<vmem>>, %arg5: memref<128x128xf32, #tpu.memory_space<vmem>>, %arg6: memref<!tpu.dma_semaphore, #tpu.memory_space<semaphore_mem>>) attributes {dimension_semantics = [], scalar_prefetch = 0 : i64, scratch_operands = 2 : i64, tpu.core_type = #tpu.core_type<tc>} {
    tpu.enqueue_dma source(%arg3 : memref<128x128xf32, #tpu.memory_space<any>>) target(%arg5 : memref<128x128xf32, #tpu.memory_space<vmem>>) target_semaphore(%arg6 : memref<!tpu.dma_semaphore, #tpu.memory_space<semaphore_mem>>)
    %c0 = arith.constant 0 : index
    %c0_0 = arith.constant 0 : index
    %0 = vector.load %arg0[%c0, %c0_0] : memref<8x64xf32, #tpu.memory_space<vmem>>, vector<8x64xf32>
    %c0_1 = arith.constant 0 : index
    %c0_2 = arith.constant 0 : index
    %1 = vector.load %arg1[%c0_1, %c0_2] : memref<64x128xf32, #tpu.memory_space<vmem>>, vector<64x128xf32>
    %cst = arith.constant dense<0.000000e+00> : vector<8x128xf32>
    %2 = tpu.matmul %0, %1, %cst {dimension_numbers = #tpu.dot_dimension_numbers<[1], [0], [0], [1], [0, 0, 1, 1], [], []>} : vector<8x64xf32>, vector<64x128xf32>, vector<8x128xf32> -> vector<8x128xf32>
    %c0_3 = arith.constant 0 : index
    %c0_4 = arith.constant 0 : index
    %3 = vector.load %arg2[%c0_3, %c0_4] : memref<6x128xf32, #tpu.memory_space<vmem>>, vector<1x128xf32>
    %c1 = arith.constant 1 : index
    %c0_5 = arith.constant 0 : index
    %4 = vector.load %arg2[%c1, %c0_5] : memref<6x128xf32, #tpu.memory_space<vmem>>, vector<1x128xf32>
    %cst_6 = arith.constant dense<0.000000e+00> : vector<128xf32>
    %5 = vector.multi_reduction <add>, %2, %cst_6 [0] : vector<8x128xf32> to vector<128xf32>
    %6 = vector.shape_cast %5 : vector<128xf32> to vector<1x128xf32>
    %cst_7 = arith.constant 8.000000e+00 : f32
    %7 = vector.broadcast %cst_7 : f32 to vector<1x128xf32>
    %8 = arith.divf %6, %7 : vector<1x128xf32>
    %9 = arith.mulf %2, %2 : vector<8x128xf32>
    %cst_8 = arith.constant dense<0.000000e+00> : vector<128xf32>
    %10 = vector.multi_reduction <add>, %9, %cst_8 [0] : vector<8x128xf32> to vector<128xf32>
    %11 = vector.shape_cast %10 : vector<128xf32> to vector<1x128xf32>
    %cst_9 = arith.constant 8.000000e+00 : f32
    %12 = vector.broadcast %cst_9 : f32 to vector<1x128xf32>
    %13 = arith.divf %11, %12 : vector<1x128xf32>
    %14 = arith.mulf %8, %8 : vector<1x128xf32>
    %15 = arith.subf %13, %14 : vector<1x128xf32>
    %cst_10 = arith.constant 0.000000e+00 : f32
    %16 = vector.broadcast %cst_10 : f32 to vector<1x128xf32>
    %17 = arith.maximumf %15, %16 : vector<1x128xf32>
    %cst_11 = arith.constant 9.99999974E-6 : f32
    %18 = vector.broadcast %cst_11 : f32 to vector<1x128xf32>
    %19 = arith.addf %17, %18 : vector<1x128xf32>
    %20 = math.rsqrt %19 : vector<1x128xf32>
    %21 = arith.mulf %3, %20 : vector<1x128xf32>
    %22 = arith.mulf %8, %21 : vector<1x128xf32>
    %23 = arith.subf %4, %22 : vector<1x128xf32>
    %24 = vector.broadcast %21 : vector<1x128xf32> to vector<8x128xf32>
    %25 = arith.mulf %2, %24 : vector<8x128xf32>
    %26 = vector.broadcast %23 : vector<1x128xf32> to vector<8x128xf32>
    %27 = arith.addf %25, %26 : vector<8x128xf32>
    %cst_12 = arith.constant 2.000000e-01 : f32
    %28 = vector.broadcast %cst_12 : f32 to vector<8x128xf32>
    %29 = arith.mulf %28, %27 : vector<8x128xf32>
    %30 = arith.maximumf %27, %29 : vector<8x128xf32>
    tpu.wait_dma2 semaphore(%arg6 : memref<!tpu.dma_semaphore, #tpu.memory_space<semaphore_mem>>) src(%arg3 : memref<128x128xf32, #tpu.memory_space<any>>) dst(%arg5 : memref<128x128xf32, #tpu.memory_space<vmem>>)
    %c0_13 = arith.constant 0 : index
    %c0_14 = arith.constant 0 : index
    %31 = vector.load %arg5[%c0_13, %c0_14] : memref<128x128xf32, #tpu.memory_space<vmem>>, vector<128x128xf32>
    %cst_15 = arith.constant dense<0.000000e+00> : vector<8x128xf32>
    %32 = tpu.matmul %30, %31, %cst_15 {dimension_numbers = #tpu.dot_dimension_numbers<[1], [0], [0], [1], [0, 0, 1, 1], [], []>} : vector<8x128xf32>, vector<128x128xf32>, vector<8x128xf32> -> vector<8x128xf32>
    %c2 = arith.constant 2 : index
    %c0_16 = arith.constant 0 : index
    %33 = vector.load %arg2[%c2, %c0_16] : memref<6x128xf32, #tpu.memory_space<vmem>>, vector<1x128xf32>
    %c3 = arith.constant 3 : index
    %c0_17 = arith.constant 0 : index
    %34 = vector.load %arg2[%c3, %c0_17] : memref<6x128xf32, #tpu.memory_space<vmem>>, vector<1x128xf32>
    %cst_18 = arith.constant dense<0.000000e+00> : vector<128xf32>
    %35 = vector.multi_reduction <add>, %32, %cst_18 [0] : vector<8x128xf32> to vector<128xf32>
    %36 = vector.shape_cast %35 : vector<128xf32> to vector<1x128xf32>
    %cst_19 = arith.constant 8.000000e+00 : f32
    %37 = vector.broadcast %cst_19 : f32 to vector<1x128xf32>
    %38 = arith.divf %36, %37 : vector<1x128xf32>
    %39 = arith.mulf %32, %32 : vector<8x128xf32>
    %cst_20 = arith.constant dense<0.000000e+00> : vector<128xf32>
    %40 = vector.multi_reduction <add>, %39, %cst_20 [0] : vector<8x128xf32> to vector<128xf32>
    %41 = vector.shape_cast %40 : vector<128xf32> to vector<1x128xf32>
    %cst_21 = arith.constant 8.000000e+00 : f32
    %42 = vector.broadcast %cst_21 : f32 to vector<1x128xf32>
    %43 = arith.divf %41, %42 : vector<1x128xf32>
    %44 = arith.mulf %38, %38 : vector<1x128xf32>
    %45 = arith.subf %43, %44 : vector<1x128xf32>
    %cst_22 = arith.constant 0.000000e+00 : f32
    %46 = vector.broadcast %cst_22 : f32 to vector<1x128xf32>
    %47 = arith.maximumf %45, %46 : vector<1x128xf32>
    %cst_23 = arith.constant 9.99999974E-6 : f32
    %48 = vector.broadcast %cst_23 : f32 to vector<1x128xf32>
    %49 = arith.addf %47, %48 : vector<1x128xf32>
    %50 = math.rsqrt %49 : vector<1x128xf32>
    %51 = arith.mulf %33, %50 : vector<1x128xf32>
    %52 = arith.mulf %38, %51 : vector<1x128xf32>
    %53 = arith.subf %34, %52 : vector<1x128xf32>
    %54 = vector.broadcast %51 : vector<1x128xf32> to vector<8x128xf32>
    %55 = arith.mulf %32, %54 : vector<8x128xf32>
    %56 = vector.broadcast %53 : vector<1x128xf32> to vector<8x128xf32>
    %57 = arith.addf %55, %56 : vector<8x128xf32>
    %cst_24 = arith.constant 2.000000e-01 : f32
    %58 = vector.broadcast %cst_24 : f32 to vector<8x128xf32>
    %59 = arith.mulf %58, %57 : vector<8x128xf32>
    %60 = arith.maximumf %57, %59 : vector<8x128xf32>
    %c4 = arith.constant 4 : index
    %c0_25 = arith.constant 0 : index
    %61 = vector.load %arg2[%c4, %c0_25] : memref<6x128xf32, #tpu.memory_space<vmem>>, vector<1x128xf32>
    %62 = vector.broadcast %61 : vector<1x128xf32> to vector<8x128xf32>
    %63 = arith.mulf %60, %62 : vector<8x128xf32>
    %cst_26 = arith.constant dense<0.000000e+00> : vector<8xf32>
    %64 = vector.multi_reduction <add>, %63, %cst_26 [1] : vector<8x128xf32> to vector<8xf32>
    %65 = vector.shape_cast %64 : vector<8xf32> to vector<8x1xf32>
    %c5 = arith.constant 5 : index
    %c0_27 = arith.constant 0 : index
    %66 = vector.load %arg2[%c5, %c0_27] : memref<6x128xf32, #tpu.memory_space<vmem>>, vector<1x1xf32>
    %67 = vector.broadcast %66 : vector<1x1xf32> to vector<8x1xf32>
    %68 = arith.addf %65, %67 : vector<8x1xf32>
    %cst_28 = arith.constant 0.000000e+00 : f32
    %69 = vector.broadcast %cst_28 : f32 to vector<8x1xf32>
    %70 = arith.subf %69, %68 : vector<8x1xf32>
    %71 = math.exp %70 : vector<8x1xf32>
    %cst_29 = arith.constant 1.000000e+00 : f32
    %72 = vector.broadcast %cst_29 : f32 to vector<8x1xf32>
    %73 = arith.addf %72, %71 : vector<8x1xf32>
    %cst_30 = arith.constant 1.000000e+00 : f32
    %74 = vector.broadcast %cst_30 : f32 to vector<8x1xf32>
    %75 = arith.divf %74, %73 : vector<8x1xf32>
    %c0_31 = arith.constant 0 : index
    %c0_32 = arith.constant 0 : index
    %76 = vector.load %arg4[%c0_31, %c0_32] : memref<8x1xf32, #tpu.memory_space<vmem>>, vector<8x1xf32>
    tpu.vector_store %arg4[%c0_31, %c0_32], %75 {strides = array<i32>} : memref<8x1xf32, #tpu.memory_space<vmem>>, vector<8x1xf32>,
    return
  }
}

</mosaic_0001>

<llo_original>
// kernel: tpu_custom_call.1
$region0: #{tpu_custom_call.1}
  #allocation0 [shape = 'u32[]', space=smem, size = 0x4, offset = 0x4, fixed_abs, tag = 'smem constant byte address 0x4 - core index']
  #allocation1 [shape = 'u32[144,128]{1,0:T(1,128)}', space=vmem, size = 0x12000, scoped, tag = 'internal scratch']
  #allocation2 [shape = 'f32[128,128]{1,0:T(8,128)}', space=vmem, size = 0x10000, scoped, tag = 'scratch operand']
  #allocation3 [shape = 's32[1]{0}', space=sflag, size = 0x4, scoped, tag = 'scratch operand']
  #allocation9 [shape = 's32[]', space=sflag, size = 0x4, offset = 0, fixed_abs, tag = 'sflag constant byte address 0x0 - dummy sync flag']
  #allocation10 [shape = 's32[]', space=sflag, size = 0x4, offset = 0, fixed_abs, tag = 'sflag constant byte address 0x0 - dummy sync flag']
  #allocation11 [shape = 'u32[]', space=smem, size = 0x4, offset = 0x44, fixed_abs, tag = 'smem constant byte address 0x44 - assertion arg 0']
  #allocation12 [shape = 'u32[]', space=smem, size = 0x4, offset = 0x48, fixed_abs, tag = 'smem constant byte address 0x48 - assertion arg 1']
  %s0 = inlined_call_operand.hbm [shape: f32[8,64], index: 0, kind: input, shape index: {}]
  %s1 = inlined_call_operand.hbm [shape: f32[64,128], index: 1, kind: input, shape index: {}]
  %s2 = inlined_call_operand.hbm [shape: f32[6,128], index: 2, kind: input, shape index: {}]
  %s3 = inlined_call_operand.hbm [shape: f32[128,128], index: 3, kind: input, shape index: {}]
  %s4 = inlined_call_operand.vmem [shape: f32[8,1], index: 4, kind: output, shape index: {}]
  %s5 = sld [smem:[#allocation0]]
  $region38: #{tpu_custom_call.1} parent=0
    _
  %s7 = ssub.s32 1, %s5
  %s8 = scalar_select 0, %s7, %s5
  $region1: #{tpu_custom_call.1} parent=0
    #allocation4 [shape = 'u8[4096]{0}', space=vmem, size = 0x1000, scoped, tag = 'input window, operand 0, single buffered']
    #allocation5 [shape = 's32[1]{0}', space=sflag, size = 0x4, scoped, tag = 'scoped memory for tpu_custom_call.1']
    #allocation6 [shape = 'u8[32768]{0}', space=vmem, size = 0x8000, scoped, tag = 'input window, operand 1, single buffered']
    #allocation7 [shape = 's32[1]{0}', space=sflag, size = 0x4, scoped, tag = 'scoped memory for tpu_custom_call.1']
    #allocation8 [shape = 'u8[4096]{0}', space=vmem, size = 0x1000, scoped, tag = 'input window, operand 2, single buffered']
    %9 = vsyncpa [#allocation5], 0
    %10 = vsyncpa [#allocation7], 0
    // Predicated region
    $region2: #{tpu_custom_call.1} parent=1 // pred_check
      _
    $region3: #{tpu_custom_call.1} parent=1 // pred_check_branch
      %12 = sbr.rel (0) target = $region5
    $region4: #{tpu_custom_call.1} parent=1 // pred_region
      %s14 = ssub.s32 128, 128
      %15 = vsyncadd [#allocation5], %s14
      %s17 = sshll.u32 [#allocation4], 4
      %s18 = int_to_ptr.vmem [resolvable:$true] %s17
      %20 = dma.hbm_to_vmem [thread:$0]  %s0, 128, %s18, [#allocation5]
    $region5: #{tpu_custom_call.1} parent=1 // pred_fallthru
      _
    // Predicated region
    $region6: #{tpu_custom_call.1} parent=1 // pred_check
      _
    $region7: #{tpu_custom_call.1} parent=1 // pred_check_branch
      %22 = sbr.rel (0) target = $region9
    $region8: #{tpu_custom_call.1} parent=1 // pred_region
      %s24 = ssub.s32 1024, 1024
      %25 = vsyncadd [#allocation7], %s24
      %s26 = sshll.u32 [#allocation6], 4
      %s27 = int_to_ptr.vmem [resolvable:$true] %s26
      %32 = dma.hbm_to_vmem [thread:$0]  %s1, 1024, %s27, [#allocation7], 128, 128, 8
    $region9: #{tpu_custom_call.1} parent=1 // pred_fallthru
      _
    // Predicated region
    $region10: #{tpu_custom_call.1} parent=1 // pred_check
      _
    $region11: #{tpu_custom_call.1} parent=1 // pred_check_branch
      %34 = sbr.rel (0) target = $region13
    $region12: #{tpu_custom_call.1} parent=1 // pred_region
      %s36 = ssub.s32 128, 128
      %37 = vsyncadd [#allocation7], %s36
      %s39 = sshll.u32 [#allocation8], 4
      %s40 = int_to_ptr.vmem [resolvable:$true] %s39
      %42 = dma.hbm_to_vmem [thread:$0]  %s2, 128, %s40, [#allocation7]
    $region13: #{tpu_custom_call.1} parent=1 // pred_fallthru
      _
    // Predicated region
    $region14: #{tpu_custom_call.1} parent=1 // pred_check
      _
    $region15: #{tpu_custom_call.1} parent=1 // pred_check_branch
      %44 = sbr.rel (0) target = $region17
    $region16: #{tpu_custom_call.1} parent=1 // pred_region
      %45 = dma.done [#allocation5], 128
    $region17: #{tpu_custom_call.1} parent=1 // pred_fallthru
      _
    // Predicated region
    $region18: #{tpu_custom_call.1} parent=1 // pred_check
      _
    $region19: #{tpu_custom_call.1} parent=1 // pred_check_branch
      %47 = sbr.rel (0) target = $region21
    $region20: #{tpu_custom_call.1} parent=1 // pred_region
      %48 = dma.done [#allocation7], 1024
    $region21: #{tpu_custom_call.1} parent=1 // pred_fallthru
      _
    // Predicated region
    $region22: #{tpu_custom_call.1} parent=1 // pred_check
      _
    $region23: #{tpu_custom_call.1} parent=1 // pred_check_branch
      %50 = sbr.rel (0) target = $region25
    $region24: #{tpu_custom_call.1} parent=1 // pred_region
      %51 = dma.done [#allocation7], 128
    $region25: #{tpu_custom_call.1} parent=1 // pred_fallthru
      _
    // Predicated region
    $region26: #{tpu_custom_call.1} parent=1 // pred_check
      _
    $region27: #{tpu_custom_call.1} parent=1 // pred_check_branch
      %53 = sbr.rel target = $region29
    $region28: #{tpu_custom_call.1} parent=1 // pred_region
      %54 = sst [smem:[#allocation11]] [#allocation10]
      %55 = sst [smem:[#allocation12]] [#allocation9]
    $region29: #{tpu_custom_call.1} parent=1 // pred_fallthru
      _
    %57 = shalt.err (0)
    %s59 = sshll.u32 [#allocation2], 4
    %s60 = int_to_ptr.vmem [resolvable:$true] %s59
    %62 = dma.hbm_to_vmem [thread:$0]  %s3, 2048, %s60, [#allocation3]
    %v63 = vld [vmem:[#allocation4] sm:$0xff]
    %v64 = vld [vmem:[#allocation6] sm:$0xff]
    %v65 = vld [vmem:[#allocation6 + $0x8] sm:$0xff]
    %v66 = vld [vmem:[#allocation6 + $0x10] sm:$0xff]
    %v67 = vld [vmem:[#allocation6 + $0x18] sm:$0xff]
    %v68 = vld [vmem:[#allocation6 + $0x20] sm:$0xff]
    %v69 = vld [vmem:[#allocation6 + $0x28] sm:$0xff]
    %v70 = vld [vmem:[#allocation6 + $0x30] sm:$0xff]
    %v71 = vld [vmem:[#allocation6 + $0x38] sm:$0xff]
    %vm72 = vcmask 523264
    %v74 = vsel %vm72, %v63, 0
    %76 = vmatprep.subr.mxu0 0.0
    %77 = vmatpush1.msra.mxu0 0.0
    %78 = vmatprep.subr.mxu0 0.0
    %79 = vmatpush1.msra.mxu0 0.0
    %80 = vmatprep.subr.mxu0 0.0
    %81 = vmatpush1.msra.mxu0 0.0
    %82 = vmatprep.subr.mxu0 0.0
    %83 = vmatpush1.msra.mxu0 0.0
    %84 = vmatprep.subr.mxu0 0.0
    %85 = vmatpush1.msra.mxu0 0.0
    %86 = vmatprep.subr.mxu0 0.0
    %87 = vmatpush1.msra.mxu0 0.0
    %88 = vmatprep.subr.mxu0 0.0
    %89 = vmatpush1.msra.mxu0 0.0
    %90 = vmatprep.subr.mxu0 0.0
    %91 = vmatpush1.msra.mxu0 0.0
    %92 = vmatprep.subr.mxu0 0.0
    %93 = vmatpush1.msra.mxu0 %v71
    %94 = vmatprep.subr.mxu0 0.0
    %95 = vmatpush1.msra.mxu0 %v70
    %96 = vmatprep.subr.mxu0 0.0
    %97 = vmatpush1.msra.mxu0 %v69
    %98 = vmatprep.subr.mxu0 0.0
    %99 = vmatpush1.msra.mxu0 %v68
    %100 = vmatprep.subr.mxu0 0.0
    %101 = vmatpush1.msra.mxu0 %v67
    %102 = vmatprep.subr.mxu0 0.0
    %103 = vmatpush1.msra.mxu0 %v66
    %104 = vmatprep.subr.mxu0 0.0
    %105 = vmatpush1.msra.mxu0 %v65
    %106 = vmatprep.subr.mxu0 0.0
    %107 = vmatpush1.msra.mxu0 %v64
    %108 = vmatprep.subr.mxu0 0.0
    %109 = vmatpush2.msra.mxu0 0.0
    %110 = vmatprep.subr.mxu0 0.0
    %111 = vmatpush2.msra.mxu0 0.0
    %112 = vmatprep.subr.mxu0 0.0
    %113 = vmatpush2.msra.mxu0 0.0
    %114 = vmatprep.subr.mxu0 0.0
    %115 = vmatpush2.msra.mxu0 0.0
    %116 = vmatprep.subr.mxu0 0.0
    %117 = vmatpush2.msra.mxu0 0.0
    %118 = vmatprep.subr.mxu0 0.0
    %119 = vmatpush2.msra.mxu0 0.0
    %120 = vmatprep.subr.mxu0 0.0
    %121 = vmatpush2.msra.mxu0 0.0
    %122 = vmatprep.subr.mxu0 0.0
    %123 = vmatpush2.msra.mxu0 0.0
    %124 = vmatprep.subr.mxu0 0.0
    %125 = vmatpush2.msra.mxu0 0.0
    %126 = vmatprep.subr.mxu0 0.0
    %127 = vmatpush2.msra.mxu0 0.0
    %128 = vmatprep.subr.mxu0 0.0
    %129 = vmatpush2.msra.mxu0 0.0
    %130 = vmatprep.subr.mxu0 0.0
    %131 = vmatpush2.msra.mxu0 0.0
    %132 = vmatprep.subr.mxu0 0.0
    %133 = vmatpush2.msra.mxu0 0.0
    %134 = vmatprep.subr.mxu0 0.0
    %135 = vmatpush2.msra.mxu0 0.0
    %136 = vmatprep.subr.mxu0 0.0
    %137 = vmatpush2.msra.mxu0 0.0
    %138 = vmatprep.subr.mxu0 0.0
    %139 = vmatpush2.msra.mxu0 0.0
    %140 = vmatprep.mubr.f32.mxu0 0.0
    %141 = vmatmul.mubr.f32.gmra.mxu0 %v74
    %v142 = vpop.f32.mrf.mxu0
    %v143 = vadd.f32 0.0, %v142
    %v144 = vpop.f32.mrf.mxu0
    %145 = vdwg.mxu0
    %v146 = vld [vmem:[#allocation8] sm:$0x1]
    %v147 = vld [vmem:[#allocation8 + $0x1] sm:$0x1]
    %v148 = vrot.slane %v143, 4
    %v149 = vadd.f32 %v143, %v148
    %v150 = vrot.slane %v149, 2
    %v151 = vadd.f32 %v149, %v150
    %v152 = vrot.slane %v151, 1
    %v153 = vadd.f32 %v151, %v152
    %v154 = vrcp.pop 8.0
    %v155 = vmul.f32 %v153, %v154
    %v156 = vmul.f32 %v143, %v143
    %v157 = vrot.slane %v156, 4
    %v158 = vadd.f32 %v156, %v157
    %v159 = vrot.slane %v158, 2
    %v160 = vadd.f32 %v158, %v159
    %v161 = vrot.slane %v160, 1
    %v162 = vadd.f32 %v160, %v161
    %v163 = vmul.f32 %v162, %v154
    %v164 = vmul.f32 %v155, %v155
    %v165 = vsub.f32 %v163, %v164
    %v166 = vmax.f32 %v165, 0.0
    %v167 = vadd.f32 %v166, 1e-05
    %v168 = vrsqrt.pop %v167
    %v169 = vmul.f32 %v146, %v168
    %v170 = vmul.f32 %v155, %v169
    %v171 = vsub.f32 %v147, %v170
    %v172 = vlaneseq
    %v173 = vshrl.u32 %v172, 7
    %v174 = vsub.s32 0, %v173
    %v175 = vrot.slane %v169, %v174
    %v176 = vmul.f32 %v143, %v175
    %v177 = vlaneseq
    %v178 = vshrl.u32 %v177, 7
    %v179 = vsub.s32 0, %v178
    %v180 = vrot.slane %v171, %v179
    %v181 = vadd.f32 %v176, %v180
    %v182 = vmul.f32 %v181, 0.2
    %v183 = vmax.f32 %v181, %v182
    %s184 = smul.u32 128, 1
    %s185 = sshll.u32 %s184, 4
    %186 = dma.done [#allocation3], %s185
    %v187 = vld [vmem:[#allocation2] sm:$0xff]
    %v188 = vld [vmem:[#allocation2 + $0x8] sm:$0xff]
    %v189 = vld [vmem:[#allocation2 + $0x10] sm:$0xff]
    %v190 = vld [vmem:[#allocation2 + $0x18] sm:$0xff]
    %v191 = vld [vmem:[#allocation2 + $0x20] sm:$0xff]
    %v192 = vld [vmem:[#allocation2 + $0x28] sm:$0xff]
    %v193 = vld [vmem:[#allocation2 + $0x30] sm:$0xff]
    %v194 = vld [vmem:[#allocation2 + $0x38] sm:$0xff]
    %v195 = vld [vmem:[#allocation2 + $0x40] sm:$0xff]
    %v196 = vld [vmem:[#allocation2 + $0x48] sm:$0xff]
    %v197 = vld [vmem:[#allocation2 + $0x50] sm:$0xff]
    %v198 = vld [vmem:[#allocation2 + $0x58] sm:$0xff]
    %v199 = vld [vmem:[#allocation2 + $0x60] sm:$0xff]
    %v200 = vld [vmem:[#allocation2 + $0x68] sm:$0xff]
    %v201 = vld [vmem:[#allocation2 + $0x70] sm:$0xff]
    %v202 = vld [vmem:[#allocation2 + $0x78] sm:$0xff]
    %203 = vmatprep.subr.mxu0 0.0
    %204 = vmatpush1.msra.mxu0 %v202
    %205 = vmatprep.subr.mxu0 0.0
    %206 = vmatpush1.msra.mxu0 %v201
    %207 = vmatprep.subr.mxu0 0.0
    %208 = vmatpush1.msra.mxu0 %v200
    %209 = vmatprep.subr.mxu0 0.0
    %210 = vmatpush1.msra.mxu0 %v199
    %211 = vmatprep.subr.mxu0 0.0
    %212 = vmatpush1.msra.mxu0 %v198
    %213 = vmatprep.subr.mxu0 0.0
    %214 = vmatpush1.msra.mxu0 %v197
    %215 = vmatprep.subr.mxu0 0.0
    %216 = vmatpush1.msra.mxu0 %v196
    %217 = vmatprep.subr.mxu0 0.0
    %218 = vmatpush1.msra.mxu0 %v195
    %219 = vmatprep.subr.mxu0 0.0
    %220 = vmatpush1.msra.mxu0 %v194
    %221 = vmatprep.subr.mxu0 0.0
    %222 = vmatpush1.msra.mxu0 %v193
    %223 = vmatprep.subr.mxu0 0.0
    %224 = vmatpush1.msra.mxu0 %v192
    %225 = vmatprep.subr.mxu0 0.0
    %226 = vmatpush1.msra.mxu0 %v191
    %227 = vmatprep.subr.mxu0 0.0
    %228 = vmatpush1.msra.mxu0 %v190
    %229 = vmatprep.subr.mxu0 0.0
    %230 = vmatpush1.msra.mxu0 %v189
    %231 = vmatprep.subr.mxu0 0.0
    %232 = vmatpush1.msra.mxu0 %v188
    %233 = vmatprep.subr.mxu0 0.0
    %234 = vmatpush1.msra.mxu0 %v187
    %235 = vmatprep.subr.mxu0 0.0
    %236 = vmatpush2.msra.mxu0 0.0
    %237 = vmatprep.subr.mxu0 0.0
    %238 = vmatpush2.msra.mxu0 0.0
    %239 = vmatprep.subr.mxu0 0.0
    %240 = vmatpush2.msra.mxu0 0.0
    %241 = vmatprep.subr.mxu0 0.0
    %242 = vmatpush2.msra.mxu0 0.0
    %243 = vmatprep.subr.mxu0 0.0
    %244 = vmatpush2.msra.mxu0 0.0
    %245 = vmatprep.subr.mxu0 0.0
    %246 = vmatpush2.msra.mxu0 0.0
    %247 = vmatprep.subr.mxu0 0.0
    %248 = vmatpush2.msra.mxu0 0.0
    %249 = vmatprep.subr.mxu0 0.0
    %250 = vmatpush2.msra.mxu0 0.0
    %251 = vmatprep.subr.mxu0 0.0
    %252 = vmatpush2.msra.mxu0 0.0
    %253 = vmatprep.subr.mxu0 0.0
    %254 = vmatpush2.msra.mxu0 0.0
    %255 = vmatprep.subr.mxu0 0.0
    %256 = vmatpush2.msra.mxu0 0.0
    %257 = vmatprep.subr.mxu0 0.0
    %258 = vmatpush2.msra.mxu0 0.0
    %259 = vmatprep.subr.mxu0 0.0
    %260 = vmatpush2.msra.mxu0 0.0
    %261 = vmatprep.subr.mxu0 0.0
    %262 = vmatpush2.msra.mxu0 0.0
    %263 = vmatprep.subr.mxu0 0.0
    %264 = vmatpush2.msra.mxu0 0.0
    %265 = vmatprep.subr.mxu0 0.0
    %266 = vmatpush2.msra.mxu0 0.0
    %267 = vmatprep.mubr.f32.mxu0 0.0
    %268 = vmatmul.mubr.f32.gmra.mxu0 %v183
    %v269 = vpop.f32.mrf.mxu0
    %v270 = vadd.f32 0.0, %v269
    %v271 = vpop.f32.mrf.mxu0
    %272 = vdwg.mxu0
    %v273 = vld [vmem:[#allocation8 + $0x2] sm:$0x1]
    %v274 = vld [vmem:[#allocation8 + $0x3] sm:$0x1]
    %v275 = vrot.slane %v270, 4
    %v276 = vadd.f32 %v270, %v275
    %v277 = vrot.slane %v276, 2
    %v278 = vadd.f32 %v276, %v277
    %v279 = vrot.slane %v278, 1
    %v280 = vadd.f32 %v278, %v279
    %v281 = vmul.f32 %v280, %v154
    %v282 = vmul.f32 %v270, %v270
    %v283 = vrot.slane %v282, 4
    %v284 = vadd.f32 %v282, %v283
    %v285 = vrot.slane %v284, 2
    %v286 = vadd.f32 %v284, %v285
    %v287 = vrot.slane %v286, 1
    %v288 = vadd.f32 %v286, %v287
    %v289 = vmul.f32 %v288, %v154
    %v290 = vmul.f32 %v281, %v281
    %v291 = vsub.f32 %v289, %v290
    %v292 = vmax.f32 %v291, 0.0
    %v293 = vadd.f32 %v292, 1e-05
    %v294 = vrsqrt.pop %v293
    %v295 = vmul.f32 %v273, %v294
    %v296 = vmul.f32 %v281, %v295
    %v297 = vsub.f32 %v274, %v296
    %v298 = vlaneseq
    %v299 = vshrl.u32 %v298, 7
    %v300 = vsub.s32 0, %v299
    %v301 = vrot.slane %v295, %v300
    %v302 = vmul.f32 %v270, %v301
    %v303 = vlaneseq
    %v304 = vshrl.u32 %v303, 7
    %v305 = vsub.s32 0, %v304
    %v306 = vrot.slane %v297, %v305
    %v307 = vadd.f32 %v302, %v306
    %v308 = vmul.f32 %v307, 0.2
    %v309 = vmax.f32 %v307, %v308
    %v310 = vld [vmem:[#allocation8 + $0x4] sm:$0x1]
    %v311 = vlaneseq
    %v312 = vshrl.u32 %v311, 7
    %v313 = vsub.s32 0, %v312
    %v314 = vrot.slane %v310, %v313
    %v315 = vmul.f32 %v309, %v314
    %316 = vadd.xlane.f32.xlu0 %v315
    %v317 = vpop.xlane.xlu0 %316
    %v318 = vld [vmem:[#allocation8 + $0x5] sm:$0x1]
    %v319 = vlaneseq
    %v320 = vshrl.u32 %v319, 7
    %v321 = vsub.s32 0, %v320
    %v322 = vrot.slane %v318, %v321
    %v323 = vadd.f32 %v317, %v322
    %v324 = vsub.f32 0.0, %v323
    %v325 = vmul.f32 %v324, 1.442695
    %v326 = vpow.pop %v325
    %v327 = vadd.f32 %v326, 1.0
    %v328 = vrcp.pop %v327
    %v329 = vmul.f32 1.0, %v328
    %vm330 = vcmask 7168
    %331 = vst.msk [vmem:[%s4] sm:$0xff] %vm330, %v329
    // Predicated region
    $region30: #{tpu_custom_call.1} parent=1 // pred_check
      _
    $region31: #{tpu_custom_call.1} parent=1 // pred_check_branch
      %333 = sbr.rel (0) target = $region33
    $region32: #{tpu_custom_call.1} parent=1 // pred_region
      _
    $region33: #{tpu_custom_call.1} parent=1 // pred_fallthru
      _
    // Predicated region
    $region34: #{tpu_custom_call.1} parent=1 // pred_check
      _
    $region35: #{tpu_custom_call.1} parent=1 // pred_check_branch
      %335 = sbr.rel (0) target = $region37
    $region36: #{tpu_custom_call.1} parent=1 // pred_region
      _
    $region37: #{tpu_custom_call.1} parent=1 // pred_fallthru
      _
    %336 = vsyncpa [#allocation5], 1
    %337 = vsyncpa [#allocation7], 1
  %338 = vsyncmov [#allocation3]
  %s339 = vpop.sfrf %338
  %p340 = scmp.eq.s32.totalorder %s339, 0
  %p341 = pneg %p340
  %343 = shalt.err (%p341)

</llo_original>
